<compile_context>
chip_gen: v6e
topology: v6e:2x2x1
jax: 0.10.0
libtpu: 0.0.40
codegen_flags: <defaults>
</compile_context>

<pallas_src>
import functools

import jax
import jax.numpy as jnp
from jax import lax
from jax.experimental import pallas as pl
from jax.experimental.pallas import tpu as pltpu

EPS = 1e-5  # PyTorch nn.GroupNorm default eps.


# --------------------------------------------------------------------------
# Per-generation VMEM budgets.
# --------------------------------------------------------------------------
def _vmem_capacity_bytes():
    try:
        info = pltpu.get_tpu_info()
        for name in ("vmem_capacity_bytes", "vmem_size_bytes", "vmem_bytes"):
            v = getattr(info, name, None)
            if v:
                return int(v)
    except Exception:
        pass
    return 64 << 20  # conservative: assume the smallest (v7x) per-core VMEM


def _vmem_budgets():
    cap = _vmem_capacity_bytes()
    # v5e/v6e (128 MiB): 64 MiB scoped limit; v7x (64 MiB): 32 MiB.
    limit = min(max(cap // 2, 32 << 20), 64 << 20)
    # Leave headroom inside the scoped limit for compiler scratch / spills.
    block_budget = max(limit - (8 << 20), 16 << 20)
    return block_budget, limit


def _pick_batch_block(n, c, hw, *, in_itemsize, out_itemsize, mxu_itemsize,
                      weight_bytes, budget_bytes, max_nb=8):
    """Largest divisor NB of n whose double-buffered in+out pipeline blocks,
    plus the (previously uncounted) fixed tenants — double-buffered weights
    and the per-sample f32/MXU intermediates inside the fori_loop body —
    fit in the VMEM budget.  Also keeps the grid >= 2 steps so v7x can split
    it across both TensorCores."""
    fixed = 2 * weight_bytes + c * hw * (4 + 4 + mxu_itemsize + 4)
    per_sample = 2 * c * hw * (in_itemsize + out_itemsize)
    cap = min(n, max_nb)
    if n >= 2:
        cap = min(cap, n // 2)
    best = 1
    for nb in range(1, cap + 1):
        if n % nb == 0 and fixed + nb * per_sample <= budget_bytes:
            best = nb
    return best


# --------------------------------------------------------------------------
# Standalone GroupNorm(num_groups=1, num_channels=dim) kernel.
# One grid step handles NB batch samples; each sample is processed inside a
# fori_loop so only one (C, HW) f32 intermediate is live at a time.
# --------------------------------------------------------------------------
def _groupnorm1_kernel(x_ref, w_ref, b_ref, o_ref):
    nb, c, hw = x_ref.shape
    count = c * hw
    gw = w_ref[...]  # (C, 1) f32
    gb = b_ref[...]

    def body(i, carry):
        xs = x_ref[i].astype(jnp.float32)          # (C, HW)
        shift = xs[0:1, 0:1]                       # coarse shift vs cancellation
        d = xs - shift
        s = jnp.sum(d, keepdims=True)              # (1, 1)
        ss = jnp.sum(d * d, keepdims=True)
        mean_d = s / count
        var = jnp.maximum(ss / count - mean_d * mean_d, 0.0)  # biased (PyTorch)
        inv = lax.rsqrt(var + EPS)
        o_ref[i] = (((d - mean_d) * inv) * gw + gb).astype(o_ref.dtype)
        return carry

    lax.fori_loop(0, nb, body, 0, unroll=True)


def groupnorm1(x_nchw, weight, bias, *, out_dtype=None, batch_block=None):
    N, C, H, W = x_nchw.shape
    HW = H * W
    out_dtype = out_dtype or x_nchw.dtype
    block_budget, vmem_limit = _vmem_budgets()
    in_sz = jnp.dtype(x_nchw.dtype).itemsize
    out_sz = jnp.dtype(out_dtype).itemsize
    if batch_block is not None:
        assert N % batch_block == 0, "batch_block must divide N"
        nb = batch_block
    else:
        nb = _pick_batch_block(N, C, HW, in_itemsize=in_sz, out_itemsize=out_sz,
                               mxu_itemsize=0, weight_bytes=2 * C * 4,
                               budget_bytes=block_budget)

    x3 = x_nchw.reshape(N, C, HW)
    w2 = weight.reshape(C, 1).astype(jnp.float32)
    b2 = bias.reshape(C, 1).astype(jnp.float32)

    out = pl.pallas_call(
        _groupnorm1_kernel,
        out_shape=jax.ShapeDtypeStruct((N, C, HW), out_dtype),
        grid_spec=pltpu.PrefetchScalarGridSpec(
            num_scalar_prefetch=0,
            grid=(N // nb,),
            in_specs=[
                pl.BlockSpec((nb, C, HW), lambda n: (n, 0, 0)),
                pl.BlockSpec((C, 1), lambda n: (0, 0)),
                pl.BlockSpec((C, 1), lambda n: (0, 0)),
            ],
            out_specs=pl.BlockSpec((nb, C, HW), lambda n: (n, 0, 0)),
        ),
        compiler_params=pltpu.CompilerParams(
            dimension_semantics=("parallel",),
            vmem_limit_bytes=vmem_limit,
        ),
        cost_estimate=pl.CostEstimate(
            flops=8 * N * C * HW,
            transcendentals=N,
            bytes_accessed=N * C * HW * (in_sz + out_sz) + 2 * C * 4,
        ),
    )(x3, w2, b2)
    return out.reshape(N, C, H, W)


# --------------------------------------------------------------------------
# Fused PreNorm kernel for the common case fn = 1x1 Conv2d(dim, dim):
#   stats -> normalize -> (folded affine+conv) matmul, all in one body.
# The GroupNorm affine is folded into the conv weight/bias on the host, so
# the kernel receives only the folded (C, C) weight and (C, 1) bias.
# --------------------------------------------------------------------------
def _gn_conv1x1_kernel(x_ref, w_ref, b_ref, o_ref, *, mxu_dtype, use_mxu):
    nb, c, hw = x_ref.shape
    count = c * hw
    w = w_ref[...]   # (C, C): mxu_dtype (MXU path) or f32 (VPU path) — cast on host
    b = b_ref[...]   # (C, 1) f32

    def body(i, carry):
        xs = x_ref[i].astype(jnp.float32)          # (C, HW) — only live copy
        shift = xs[0:1, 0:1]                       # coarse shift vs cancellation
        d = xs - shift
        s = jnp.sum(d, keepdims=True)
        ss = jnp.sum(d * d, keepdims=True)
        mean_d = s / count
        var = jnp.maximum(ss / count - mean_d * mean_d, 0.0)  # biased (PyTorch)
        inv = lax.rsqrt(var + EPS)
        xn = (d - mean_d) * inv                    # == (x - mean) * rsqrt(var+eps)

        if use_mxu:
            y = jnp.dot(w, xn.astype(mxu_dtype),
                        preferred_element_type=jnp.float32) + b
        else:
            # Tiny C: 1x1 conv as C rank-1 VPU multiply-adds (MXU would be
            # <1% utilized and pays push/pop latency per sample).
            acc = jnp.broadcast_to(b, (c, hw)).astype(jnp.float32)
            for ci in range(c):
                acc = acc + w[:, ci:ci + 1] * xn[ci:ci + 1, :]
            y = acc
        o_ref[i] = y.astype(o_ref.dtype)
        return carry

    lax.fori_loop(0, nb, body, 0, unroll=True)


def pre_norm_conv1x1(x_nchw, gn_weight, gn_bias, conv_weight, conv_bias, *,
                     mxu_dtype=None, out_dtype=None, batch_block=None,
                     use_mxu=None):
    """Fused GroupNorm(1, C) + pointwise Conv2d(C, C, 1).

    I/O dtype follows the input (pass bf16 activations to halve HBM traffic);
    stats/normalize always run in f32, matmul accumulates in f32."""
    N, C, H, W = x_nchw.shape
    HW = H * W
    out_dtype = out_dtype or x_nchw.dtype
    if use_mxu is None:
        use_mxu = C > 32
    if mxu_dtype is None:
        mxu_dtype = jnp.bfloat16 if C >= 128 else jnp.float32
    w_dtype = mxu_dtype if use_mxu else jnp.float32

    # Fold GroupNorm affine into the conv: W' = W * gw (columns), b' = W@gb + cb.
    cw = conv_weight.reshape(C, C).astype(jnp.float32)
    w_folded = (cw * gn_weight.reshape(1, C).astype(jnp.float32)).astype(w_dtype)
    b_folded = (cw @ gn_bias.reshape(C, 1).astype(jnp.float32)
                + conv_bias.reshape(C, 1).astype(jnp.float32))

    block_budget, vmem_limit = _vmem_budgets()
    in_sz = jnp.dtype(x_nchw.dtype).itemsize
    out_sz = jnp.dtype(out_dtype).itemsize
    w_sz = jnp.dtype(w_dtype).itemsize
    if batch_block is not None:
        assert N % batch_block == 0, "batch_block must divide N"
        nb = batch_block
    else:
        nb = _pick_batch_block(N, C, HW, in_itemsize=in_sz, out_itemsize=out_sz,
                               mxu_itemsize=w_sz,
                               weight_bytes=C * C * w_sz + C * 4,
                               budget_bytes=block_budget)

    x3 = x_nchw.reshape(N, C, HW)
    kernel = functools.partial(_gn_conv1x1_kernel, mxu_dtype=mxu_dtype,
                               use_mxu=use_mxu)
    cost = pl.CostEstimate(
        flops=2 * N * C * C * HW + 8 * N * C * HW,
        transcendentals=N,
        bytes_accessed=N * C * HW * (in_sz + out_sz) + C * C * w_sz + C * 4,
    )

    out = pl.pallas_call(
        kernel,
        out_shape=jax.ShapeDtypeStruct((N, C, HW), out_dtype),
        grid_spec=pltpu.PrefetchScalarGridSpec(
            num_scalar_prefetch=0,
            grid=(N // nb,),
            in_specs=[
                pl.BlockSpec((nb, C, HW), lambda n: (n, 0, 0)),
                pl.BlockSpec((C, C), lambda n: (0, 0)),
                pl.BlockSpec((C, 1), lambda n: (0, 0)),
            ],
            out_specs=pl.BlockSpec((nb, C, HW), lambda n: (n, 0, 0)),
        ),
        compiler_params=pltpu.CompilerParams(
            dimension_semantics=("parallel",),
            vmem_limit_bytes=vmem_limit,
        ),
        cost_estimate=cost,
    )(x3, w_folded, b_folded)
    return out.reshape(N, C, H, W)


# --------------------------------------------------------------------------
# Generic PreNorm: x -> GroupNorm(1, dim)(x) -> fn(x), for arbitrary fn.
# NOTE: this path round-trips the normalized tensor through HBM (~3x the
# fused path's traffic); route any matmul-like fn through pre_norm_conv1x1.
# --------------------------------------------------------------------------
def pre_norm(x, gn_weight, gn_bias, fn):
    return fn(groupnorm1(x, gn_weight, gn_bias))


# Pure-JAX references for correctness checks.
def _gn_reference(x, gw, gb):
    N, C, H, W = x.shape
    xf = x.astype(jnp.float32).reshape(N, -1)
    mean = xf.mean(axis=1, keepdims=True)
    var = ((xf - mean) ** 2).mean(axis=1, keepdims=True)
    xn = ((xf - mean) / jnp.sqrt(var + EPS)).reshape(N, C, H, W)
    return xn * gw.reshape(1, C, 1, 1) + gb.reshape(1, C, 1, 1)


def _reference(x, gw, gb, cw, cb):
    C = x.shape[1]
    xn = _gn_reference(x, gw, gb)
    return jnp.einsum("oc,nchw->nohw", cw, xn) + cb.reshape(1, C, 1, 1)


if __name__ == "__main__":
    key = jax.random.PRNGKey(0)
    N, C, H, W = 2, 4, 16, 16
    kx, kgw, kgb, kcw, kcb = jax.random.split(key, 5)

    x = jax.random.normal(kx, (N, C, H, W), dtype=jnp.float32)
    gn_weight = 1.0 + 0.1 * jax.random.normal(kgw, (C,), dtype=jnp.float32)
    gn_bias = 0.1 * jax.random.normal(kgb, (C,), dtype=jnp.float32)
    conv_w = 0.2 * jax.random.normal(kcw, (C, C), dtype=jnp.float32)
    conv_b = 0.05 * jax.random.normal(kcb, (C,), dtype=jnp.float32)

    ref = _reference(x, gn_weight, gn_bias, conv_w, conv_b)

    # 1) Fused GroupNorm + 1x1 conv, f32 I/O, default path (VPU conv at C=4).
    out = pre_norm_conv1x1(x, gn_weight, gn_bias, conv_w, conv_b)
    out = jax.block_until_ready(out)
    assert jnp.allclose(out, ref, atol=1e-4, rtol=1e-4), "fused VPU-path mismatch"

    # 2) Fused, MXU matmul path forced (f32 operands at this C, f32 accum).
    out_mxu = pre_norm_conv1x1(x, gn_weight, gn_bias, conv_w, conv_b,
                               use_mxu=True)
    out_mxu = jax.block_until_ready(out_mxu)
    assert jnp.allclose(out_mxu, ref, atol=1e-4, rtol=1e-4), "fused MXU-path mismatch"

    # 3) bf16 I/O path (halves HBM bytes; stats/accum stay f32 in-kernel).
    x_bf = x.astype(jnp.bfloat16)
    ref_bf = _reference(x_bf.astype(jnp.float32), gn_weight, gn_bias, conv_w, conv_b)
    out_bf = pre_norm_conv1x1(x_bf, gn_weight, gn_bias, conv_w, conv_b)
    out_bf = jax.block_until_ready(out_bf)
    assert jnp.allclose(out_bf.astype(jnp.float32), ref_bf,
                        atol=5e-2, rtol=5e-2), "fused bf16-I/O mismatch"

    # 4) Generic PreNorm with an arbitrary (non-fused) fn callable.
    fn = lambda y: jnp.einsum("oc,nchw->nohw", conv_w, y) + conv_b.reshape(1, C, 1, 1)
    out_gen = jax.block_until_ready(pre_norm(x, gn_weight, gn_bias, fn))
    assert jnp.allclose(out_gen, ref, atol=1e-4, rtol=1e-4), "generic PreNorm mismatch"

    print("KERNEL_OK")
</pallas_src>

<mosaic_0001>
module attributes {stable_mosaic.version = 11 : i64} {
  func.func @_gn_conv1x1_kernel(%arg0: i32, %arg1: memref<1x4x256xf32, #tpu.memory_space<vmem>>, %arg2: memref<4x4xf32, #tpu.memory_space<vmem>>, %arg3: memref<4x1xf32, #tpu.memory_space<vmem>>, %arg4: memref<1x4x256xf32, #tpu.memory_space<vmem>>) attributes {dimension_semantics = [#tpu.dimension_semantics<parallel>], iteration_bounds = array<i64: 2>, scalar_prefetch = 0 : i64, scratch_operands = 0 : i64, tpu.core_type = #tpu.core_type<tc>, window_params = [{transform_indices = @transform_0, window_bounds = array<i64: 1, 4, 256>}, {pipeline_mode = #tpu.pipeline_mode<synchronous>, transform_indices = @transform_1, window_bounds = array<i64: 4, 4>}, {pipeline_mode = #tpu.pipeline_mode<synchronous>, transform_indices = @transform_2, window_bounds = array<i64: 4, 1>}, {transform_indices = @transform_3, window_bounds = array<i64: 1, 4, 256>}]} {
    %c0 = arith.constant 0 : index
    %c0_0 = arith.constant 0 : index
    %0 = vector.load %arg2[%c0, %c0_0] : memref<4x4xf32, #tpu.memory_space<vmem>>, vector<4x4xf32>
    %c0_1 = arith.constant 0 : index
    %c0_2 = arith.constant 0 : index
    %1 = vector.load %arg3[%c0_1, %c0_2] : memref<4x1xf32, #tpu.memory_space<vmem>>, vector<4x1xf32>
    %c0_i32 = arith.constant 0 : i32
    %2 = arith.index_cast %c0_i32 : i32 to index
    %c0_3 = arith.constant 0 : index
    %c0_4 = arith.constant 0 : index
    %3 = vector.load %arg1[%2, %c0_3, %c0_4] : memref<1x4x256xf32, #tpu.memory_space<vmem>>, vector<1x4x256xf32>
    %4 = vector.shape_cast %3 : vector<1x4x256xf32> to vector<4x256xf32>
    %5 = vector.extract_strided_slice %4 {offsets = [0, 0], sizes = [1, 1], strides = [1, 1]} : vector<4x256xf32> to vector<1x1xf32>
    %6 = vector.broadcast %5 : vector<1x1xf32> to vector<4x256xf32>
    %7 = arith.subf %4, %6 : vector<4x256xf32>
    %8 = vector.shape_cast %7 : vector<4x256xf32> to vector<1x4x256xf32>
    %cst = arith.constant dense<0.000000e+00> : vector<1xf32>
    %9 = vector.multi_reduction <add>, %8, %cst [1, 2] : vector<1x4x256xf32> to vector<1xf32>
    %10 = vector.shape_cast %9 : vector<1xf32> to vector<1x1x1xf32>
    %11 = vector.extract %10[0, 0, 0] : f32 from vector<1x1x1xf32>
    %12 = vector.broadcast %11 : f32 to vector<1x1xf32>
    %13 = arith.mulf %7, %7 : vector<4x256xf32>
    %14 = vector.shape_cast %13 : vector<4x256xf32> to vector<1x4x256xf32>
    %cst_5 = arith.constant dense<0.000000e+00> : vector<1xf32>
    %15 = vector.multi_reduction <add>, %14, %cst_5 [1, 2] : vector<1x4x256xf32> to vector<1xf32>
    %16 = vector.shape_cast %15 : vector<1xf32> to vector<1x1x1xf32>
    %17 = vector.extract %16[0, 0, 0] : f32 from vector<1x1x1xf32>
    %18 = vector.broadcast %17 : f32 to vector<1x1xf32>
    %cst_6 = arith.constant 1.024000e+03 : f32
    %19 = vector.broadcast %cst_6 : f32 to vector<1x1xf32>
    %20 = arith.divf %12, %19 : vector<1x1xf32>
    %cst_7 = arith.constant 1.024000e+03 : f32
    %21 = vector.broadcast %cst_7 : f32 to vector<1x1xf32>
    %22 = arith.divf %18, %21 : vector<1x1xf32>
    %23 = arith.mulf %20, %20 : vector<1x1xf32>
    %24 = arith.subf %22, %23 : vector<1x1xf32>
    %cst_8 = arith.constant 0.000000e+00 : f32
    %25 = vector.broadcast %cst_8 : f32 to vector<1x1xf32>
    %26 = arith.maximumf %24, %25 : vector<1x1xf32>
    %cst_9 = arith.constant 9.99999974E-6 : f32
    %27 = vector.broadcast %cst_9 : f32 to vector<1x1xf32>
    %28 = arith.addf %26, %27 : vector<1x1xf32>
    %29 = math.rsqrt %28 : vector<1x1xf32>
    %30 = vector.broadcast %20 : vector<1x1xf32> to vector<4x256xf32>
    %31 = arith.subf %7, %30 : vector<4x256xf32>
    %32 = vector.broadcast %29 : vector<1x1xf32> to vector<4x256xf32>
    %33 = arith.mulf %31, %32 : vector<4x256xf32>
    %34 = vector.shape_cast %1 : vector<4x1xf32> to vector<4x1xf32>
    %35 = vector.broadcast %34 : vector<4x1xf32> to vector<4x256xf32>
    %36 = vector.extract_strided_slice %0 {offsets = [0, 0], sizes = [4, 1], strides = [1, 1]} : vector<4x4xf32> to vector<4x1xf32>
    %37 = vector.extract_strided_slice %33 {offsets = [0, 0], sizes = [1, 256], strides = [1, 1]} : vector<4x256xf32> to vector<1x256xf32>
    %38 = vector.broadcast %36 : vector<4x1xf32> to vector<4x256xf32>
    %39 = vector.broadcast %37 : vector<1x256xf32> to vector<4x256xf32>
    %40 = arith.mulf %38, %39 : vector<4x256xf32>
    %41 = arith.addf %35, %40 : vector<4x256xf32>
    %42 = vector.extract_strided_slice %0 {offsets = [0, 1], sizes = [4, 1], strides = [1, 1]} : vector<4x4xf32> to vector<4x1xf32>
    %43 = vector.extract_strided_slice %33 {offsets = [1, 0], sizes = [1, 256], strides = [1, 1]} : vector<4x256xf32> to vector<1x256xf32>
    %44 = vector.broadcast %42 : vector<4x1xf32> to vector<4x256xf32>
    %45 = vector.broadcast %43 : vector<1x256xf32> to vector<4x256xf32>
    %46 = arith.mulf %44, %45 : vector<4x256xf32>
    %47 = arith.addf %41, %46 : vector<4x256xf32>
    %48 = vector.extract_strided_slice %0 {offsets = [0, 2], sizes = [4, 1], strides = [1, 1]} : vector<4x4xf32> to vector<4x1xf32>
    %49 = vector.extract_strided_slice %33 {offsets = [2, 0], sizes = [1, 256], strides = [1, 1]} : vector<4x256xf32> to vector<1x256xf32>
    %50 = vector.broadcast %48 : vector<4x1xf32> to vector<4x256xf32>
    %51 = vector.broadcast %49 : vector<1x256xf32> to vector<4x256xf32>
    %52 = arith.mulf %50, %51 : vector<4x256xf32>
    %53 = arith.addf %47, %52 : vector<4x256xf32>
    %54 = vector.extract_strided_slice %0 {offsets = [0, 3], sizes = [4, 1], strides = [1, 1]} : vector<4x4xf32> to vector<4x1xf32>
    %55 = vector.extract_strided_slice %33 {offsets = [3, 0], sizes = [1, 256], strides = [1, 1]} : vector<4x256xf32> to vector<1x256xf32>
    %56 = vector.broadcast %54 : vector<4x1xf32> to vector<4x256xf32>
    %57 = vector.broadcast %55 : vector<1x256xf32> to vector<4x256xf32>
    %58 = arith.mulf %56, %57 : vector<4x256xf32>
    %59 = arith.addf %53, %58 : vector<4x256xf32>
    %60 = arith.index_cast %c0_i32 : i32 to index
    %c0_10 = arith.constant 0 : index
    %c0_11 = arith.constant 0 : index
    %61 = vector.load %arg4[%60, %c0_10, %c0_11] : memref<1x4x256xf32, #tpu.memory_space<vmem>>, vector<1x4x256xf32>
    %62 = vector.shape_cast %61 : vector<1x4x256xf32> to vector<4x256xf32>
    %63 = vector.shape_cast %59 : vector<4x256xf32> to vector<1x4x256xf32>
    tpu.vector_store %arg4[%60, %c0_10, %c0_11], %63 {strides = array<i32>} : memref<1x4x256xf32, #tpu.memory_space<vmem>>, vector<1x4x256xf32>,
    %c1_i32 = arith.constant 1 : i32
    return
  }
  func.func @transform_0(%arg0: i32) -> (i32, i32, i32) {
    %c0_i32 = arith.constant 0 : i32
    %c0_i32_0 = arith.constant 0 : i32
    %c0_i32_1 = arith.constant 0 : i32
    return %arg0, %c0_i32, %c0_i32_0 : i32, i32, i32
  }
  func.func @transform_1(%arg0: i32) -> (i32, i32) {
    %c0_i32 = arith.constant 0 : i32
    %c0_i32_0 = arith.constant 0 : i32
    %c0_i32_1 = arith.constant 0 : i32
    return %c0_i32, %c0_i32_0 : i32, i32
  }
  func.func @transform_2(%arg0: i32) -> (i32, i32) {
    %c0_i32 = arith.constant 0 : i32
    %c0_i32_0 = arith.constant 0 : i32
    %c0_i32_1 = arith.constant 0 : i32
    return %c0_i32, %c0_i32_0 : i32, i32
  }
  func.func @transform_3(%arg0: i32) -> (i32, i32, i32) {
    %c0_i32 = arith.constant 0 : i32
    %c0_i32_0 = arith.constant 0 : i32
    %c0_i32_1 = arith.constant 0 : i32
    return %arg0, %c0_i32, %c0_i32_0 : i32, i32, i32
  }
}

</mosaic_0001>

<llo_original>
// kernel: tpu_custom_call.1
$region0: #{tpu_custom_call.1}
  #allocation0 [shape = 'u32[]', space=smem, size = 0x4, offset = 0x4, fixed_abs, tag = 'smem constant byte address 0x4 - core index']
  #allocation1 [shape = 'u32[144,128]{1,0:T(1,128)}', space=vmem, size = 0x12000, scoped, tag = 'internal scratch']
  %s0 = inlined_call_operand.hbm [shape: f32[2,4,256], index: 0, kind: input, shape index: {}]
  %s1 = inlined_call_operand.vmem [shape: f32[4,4], index: 1, kind: input, shape index: {}]
  %s2 = inlined_call_operand.vmem [shape: f32[4,1], index: 2, kind: input, shape index: {}]
  %s3 = inlined_call_operand.hbm [shape: f32[2,4,256], index: 3, kind: output, shape index: {}]
  %s4 = sld [smem:[#allocation0]]
  $region49: #{tpu_custom_call.1} parent=0
    _
  %s6 = ssub.s32 1, %s4
  %s7 = scalar_select 0, %s6, %s4
  $region1: #{tpu_custom_call.1} parent=0
    #allocation2 [shape = 'u8[8192]{0}', space=vmem, size = 0x2000, scoped, tag = 'input window, operand 0']
    #allocation3 [shape = 's32[2]{0}', space=sflag, size = 0x8, scoped, tag = 'scoped memory for tpu_custom_call.1']
    #allocation4 [shape = 's32[2]{0}', space=sflag, size = 0x8, scoped, tag = 'scoped memory for tpu_custom_call.1']
    #allocation5 [shape = 'u8[8192]{0}', space=vmem, size = 0x2000, scoped, tag = 'output window, operand 0']
    %8 = vsyncpa [#allocation3], 0
    %s9 = scalar_lea.sflag [#allocation3], 1
    %10 = vsyncpa %s9, 0
    %11 = vsyncpa [#allocation4], 0
    %s12 = scalar_lea.sflag [#allocation4], 1
    %13 = vsyncpa %s12, 0
    loop: start=0, step=1, limit=4
    $region2: #{tpu_custom_call.1} parent=1 // loop_pre_header
      _
    $region3: #{tpu_custom_call.1} parent=1 // loop_header
      %s15 = sphi 0, %s19
      %p16 = scmp.ge.s32.totalorder %s15, 4
      %s25 = sphi 0, %s27
      %s28 = sphi 0, %s25
      %s29 = sphi 0, %s28
      %s45 = sphi 0, %s29
      %s49 = sphi 0, %s49
      %s51 = sphi 0, %s49
      %s52 = sphi 0, %s51
      %s66 = sphi 0, %s52
      %s70 = sphi 0, %s70
      %s72 = sphi 0, %s70
      %s73 = sphi 0, %s72
      %s87 = sphi 0, %s73
      %s93 = sphi 0, %s95
      %s96 = sphi 0, %s93
      %s97 = sphi 0, %s96
      %s113 = sphi 0, %s97
    $region4: #{tpu_custom_call.1} parent=1 // loop_header_branch
      %18 = sbr.rel (%p16) target = $region8
    $region5: #{tpu_custom_call.1} parent=1 // loop_body
      %s20 = ssub.s32 %s15, 1
      %s21 = ssub.s32 %s15, 2
      %s22 = sadd.s32 %s15, 1
      %s23 = ssub.s32 %s15, %s22
      %p24 = scmp.eq.s32.totalorder %s23, 0
      %s26 = sadd.s32 %s25, 1
      %s27 = scalar_select %p24, %s25, %s26
      %p30 = pneg %p24
      %p31 = scmp.eq.s32.totalorder %s15, 1
      %p32 = por %p30, %p31
      %p33 = scmp.ne.s32.totalorder %s25, %s28
      %p34 = scmp.eq.s32.totalorder %s15, 0
      %p35 = por %p33, %p34
      %p36 = scmp.ne.s32.totalorder %s25, %s28
      %p37 = scmp.eq.s32.totalorder %s20, 1
      %p38 = por %p36, %p37
      %p39 = scmp.ne.s32.totalorder %s28, %s29
      %p40 = scmp.eq.s32.totalorder %s20, 0
      %p41 = por %p39, %p40
      %p42 = scmp.ne.s32.totalorder %s28, %s29
      %p43 = scmp.eq.s32.totalorder %s21, 1
      %p44 = por %p42, %p43
      %p46 = scmp.ne.s32.totalorder %s29, %s45
      %p47 = scmp.eq.s32.totalorder %s21, 0
      %p48 = por %p46, %p47
      %s50 = sadd.s32 %s49, 1
      %p53 = scmp.eq.s32.totalorder %s15, 1
      %p54 = scmp.ne.s32.totalorder %s49, %s51
      %p55 = scmp.eq.s32.totalorder %s15, 0
      %p56 = por %p54, %p55
      %p57 = scmp.ne.s32.totalorder %s49, %s51
      %p58 = scmp.eq.s32.totalorder %s20, 1
      %p59 = por %p57, %p58
      %p60 = scmp.ne.s32.totalorder %s51, %s52
      %p61 = scmp.eq.s32.totalorder %s20, 0
      %p62 = por %p60, %p61
      %p63 = scmp.ne.s32.totalorder %s51, %s52
      %p64 = scmp.eq.s32.totalorder %s21, 1
      %p65 = por %p63, %p64
      %p67 = scmp.ne.s32.totalorder %s52, %s66
      %p68 = scmp.eq.s32.totalorder %s21, 0
      %p69 = por %p67, %p68
      %s71 = sadd.s32 %s70, 1
      %p74 = scmp.eq.s32.totalorder %s15, 1
      %p75 = scmp.ne.s32.totalorder %s70, %s72
      %p76 = scmp.eq.s32.totalorder %s15, 0
      %p77 = por %p75, %p76
      %p78 = scmp.ne.s32.totalorder %s70, %s72
      %p79 = scmp.eq.s32.totalorder %s20, 1
      %p80 = por %p78, %p79
      %p81 = scmp.ne.s32.totalorder %s72, %s73
      %p82 = scmp.eq.s32.totalorder %s20, 0
      %p83 = por %p81, %p82
      %p84 = scmp.ne.s32.totalorder %s72, %s73
      %p85 = scmp.eq.s32.totalorder %s21, 1
      %p86 = por %p84, %p85
      %p88 = scmp.ne.s32.totalorder %s73, %s87
      %p89 = scmp.eq.s32.totalorder %s21, 0
      %p90 = por %p88, %p89
      %s91 = ssub.s32 %s15, %s22
      %p92 = scmp.eq.s32.totalorder %s91, 0
      %s94 = sadd.s32 %s93, 1
      %s95 = scalar_select %p92, %s93, %s94
      %p98 = pneg %p92
      %p99 = scmp.eq.s32.totalorder %s15, 1
      %p100 = por %p98, %p99
      %p101 = scmp.ne.s32.totalorder %s93, %s96
      %p102 = scmp.eq.s32.totalorder %s15, 0
      %p103 = por %p101, %p102
      %p104 = scmp.ne.s32.totalorder %s93, %s96
      %p105 = scmp.eq.s32.totalorder %s20, 1
      %p106 = por %p104, %p105
      %p107 = scmp.ne.s32.totalorder %s96, %s97
      %p108 = scmp.eq.s32.totalorder %s20, 0
      %p109 = por %p107, %p108
      %p110 = scmp.ne.s32.totalorder %s96, %s97
      %p111 = scmp.eq.s32.totalorder %s21, 1
      %p112 = por %p110, %p111
      %p114 = scmp.ne.s32.totalorder %s97, %s113
      %p115 = scmp.eq.s32.totalorder %s21, 0
      %p116 = por %p114, %p115
      %p117 = scmp.le.s32.totalorder 1, %s15
      %p118 = scmp.lt.s32.totalorder %s15, 3
      %p119 = pnand %p117, %p118
      %p120 = pneg %p119
      // Predicated region
      $region9: #{tpu_custom_call.1} parent=5 // pred_check
        _
      $region10: #{tpu_custom_call.1} parent=5 // pred_check_branch
        %122 = sbr.rel (%p119) target = $region12
      $region11: #{tpu_custom_call.1} parent=5 // pred_region
        %s123 = ssub.s32 %s15, 1
        // Predicated region
        $region13: #{tpu_custom_call.1} parent=11 // pred_check
          %p124 = pneg %p62
        $region14: #{tpu_custom_call.1} parent=11 // pred_check_branch
          %126 = sbr.rel (%p124) target = $region16
        $region15: #{tpu_custom_call.1} parent=11 // pred_region
          _
        $region16: #{tpu_custom_call.1} parent=11 // pred_fallthru
          _
        // Predicated region
        $region17: #{tpu_custom_call.1} parent=11 // pred_check
          %p127 = pneg %p83
        $region18: #{tpu_custom_call.1} parent=11 // pred_check_branch
          %129 = sbr.rel (%p127) target = $region20
        $region19: #{tpu_custom_call.1} parent=11 // pred_region
          _
        $region20: #{tpu_custom_call.1} parent=11 // pred_fallthru
          _
      $region12: #{tpu_custom_call.1} parent=5 // pred_fallthru
        _
      %p130 = scmp.lt.s32.totalorder %s15, 2
      // Predicated region
      $region21: #{tpu_custom_call.1} parent=5 // pred_check
        %p131 = pneg %p130
      $region22: #{tpu_custom_call.1} parent=5 // pred_check_branch
        %133 = sbr.rel (%p131) target = $region24
      $region23: #{tpu_custom_call.1} parent=5 // pred_region
        // Predicated region
        $region25: #{tpu_custom_call.1} parent=23 // pred_check
          %p134 = pneg %p35
        $region26: #{tpu_custom_call.1} parent=23 // pred_check_branch
          %136 = sbr.rel (%p134) target = $region28
        $region27: #{tpu_custom_call.1} parent=23 // pred_region
          %s137 = sand.u32 %s25, 1
          %s138 = scalar_lea.sflag [#allocation3], %s137
          %s139 = sand.u32 %s25, 1
          %s140 = smul.addr %s139, 8
          %s141 = scalar_lea.vmem [#allocation2], %s140
          %s143 = ssub.s32 128, 128
          %144 = vsyncadd %s138, %s143
          %s145 = smul.addr %s15, 2
          %s146 = smul.addr %s145, 64
          %s147 = scalar_lea.hbm %s0, %s146
          %s149 = sshll.u32 %s141, 4
          %s150 = int_to_ptr.vmem [resolvable:$true] %s149
          %152 = dma.hbm_to_vmem [thread:$0]  %s147, 128, %s150, %s138
        $region28: #{tpu_custom_call.1} parent=23 // pred_fallthru
          _
      $region24: #{tpu_custom_call.1} parent=5 // pred_fallthru
        _
      %p153 = scmp.le.s32.totalorder 1, %s15
      %p154 = scmp.lt.s32.totalorder %s15, 3
      %p155 = pnand %p153, %p154
      %p156 = pneg %p155
      // Predicated region
      $region29: #{tpu_custom_call.1} parent=5 // pred_check
        _
      $region30: #{tpu_custom_call.1} parent=5 // pred_check_branch
        %158 = sbr.rel (%p155) target = $region32
      $region31: #{tpu_custom_call.1} parent=5 // pred_region
        %s159 = ssub.s32 %s15, 1
        %s160 = sand.u32 %s28, 1
        %s161 = scalar_lea.sflag [#allocation3], %s160
        %s162 = sand.u32 %s28, 1
        %s163 = smul.addr %s162, 8
        %s164 = scalar_lea.vmem [#allocation2], %s163
        // Predicated region
        $region33: #{tpu_custom_call.1} parent=31 // pred_check
          %p165 = pneg %p41
        $region34: #{tpu_custom_call.1} parent=31 // pred_check_branch
          %167 = sbr.rel (%p165) target = $region36
        $region35: #{tpu_custom_call.1} parent=31 // pred_region
          %168 = dma.done %s161, 128
        $region36: #{tpu_custom_call.1} parent=31 // pred_fallthru
          _
        %s169 = sand.u32 %s28, 1
        %s170 = scalar_lea.sflag [#allocation3], %s169
        %s171 = sand.u32 %s28, 1
        %s172 = smul.addr %s171, 8
        %s173 = scalar_lea.vmem [#allocation2], %s172
        %p174 = pneg %p41
        %p175 = pneg %p38
        %p176 = pneg %p62
        %p177 = pneg %p59
        %p178 = pneg %p83
        %p179 = pneg %p80
        %p180 = pneg %p109
        %p181 = pneg %p106
        %s182 = sand.u32 %s96, 1
        %s183 = scalar_lea.sflag [#allocation4], %s182
        %s184 = sand.u32 %s96, 1
        %s185 = smul.addr %s184, 8
        %s186 = scalar_lea.vmem [#allocation5], %s185
        %v187 = vld [vmem:[%s1] sm:$0xf]
        %v188 = vld [vmem:[%s2] sm:$0xf]
        %v189 = vld [vmem:[%s164] sm:$0xff]
        %s191 = vtos %v189
        %v192 = vstv %s191
        %v194 = vsub.f32 %v189, %v192
        %v196 = vcombine.high %v194, %v194
        %vm198 = vcmask 1043456
        %v199 = vsel %vm198, %v194, 0.0
        %v200 = vsel %vm198, %v196, 0.0
        %v201 = vadd.f32 %v199, %v200
        %202 = vadd.xlane.f32.xlu0 %v201
        %v203 = vpop.xlane.xlu0 %202
        %v204 = vrot.slane %v203, 4
        %v205 = vadd.f32 %v203, %v204
        %v206 = vrot.slane %v205, 2
        %v207 = vadd.f32 %v205, %v206
        %v208 = vrot.slane %v207, 1
        %v209 = vadd.f32 %v207, %v208
        %s210 = vtos %v209
        %v211 = vstv %s210
        %v212 = vmul.f32 %v194, %v194
        %v214 = vcombine.high %v212, %v212
        %v216 = vsel %vm198, %v212, 0.0
        %v217 = vsel %vm198, %v214, 0.0
        %v218 = vadd.f32 %v216, %v217
        %219 = vadd.xlane.f32.xlu0 %v218
        %v220 = vpop.xlane.xlu0 %219
        %v221 = vrot.slane %v220, 4
        %v222 = vadd.f32 %v220, %v221
        %v223 = vrot.slane %v222, 2
        %v224 = vadd.f32 %v222, %v223
        %v225 = vrot.slane %v224, 1
        %v226 = vadd.f32 %v224, %v225
        %s227 = vtos %v226
        %v228 = vstv %s227
        %v229 = vrcp.pop 1024.0
        %v230 = vmul.f32 %v211, %v229
        %v231 = vmul.f32 %v228, %v229
        %v232 = vmul.f32 %v230, %v230
        %v233 = vsub.f32 %v231, %v232
        %v234 = vmax.f32 %v233, 0.0
        %v235 = vadd.f32 %v234, 1e-05
        %v236 = vrsqrt.pop %v235
        %v237 = vsub.f32 %v194, %v230
        %v238 = vmul.f32 %v237, %v236
        %240 = vset.pattern.permute.xlu0 0
        %241 = vperm.xlu0 %240, %v188
        %v242 = vpop.permute.xlu0 %241
        %245 = vset.pattern.permute.xlu0 0
        %246 = vperm.xlu0 %245, %v187
        %v247 = vpop.permute.xlu0 %246
        %v250 = vlaneseq
        %v251 = vshrl.u32 %v250, 7
        %v252 = vsub.s32 0, %v251
        %v253 = vrot.slane %v238, %v252
        %v254 = vlaneseq
        %v255 = vshrl.u32 %v254, 7
        %v256 = vsub.s32 4, %v255
        %v257 = vrot.slane %v238, %v256
        %v260 = vlaneseq
        %v261 = vshrl.u32 %v260, 7
        %v262 = vsub.s32 0, %v261
        %v263 = vrot.slane %v253, %v262
        %v264 = vlaneseq
        %v265 = vshrl.u32 %v264, 7
        %v266 = vsub.s32 0, %v265
        %v267 = vrot.slane %v257, %v266
        %v268 = vmul.f32 %v247, %v263
        %v269 = vmul.f32 %v247, %v267
        %v270 = vadd.f32 %v242, %v268
        %v271 = vadd.f32 %v242, %v269
        %272 = vset.pattern.permute.xlu0 1
        %273 = vperm.xlu0 %272, %v187
        %v274 = vpop.permute.xlu0 %273
        %v276 = vlaneseq
        %v277 = vshrl.u32 %v276, 7
        %v278 = vsub.s32 1, %v277
        %v279 = vrot.slane %v238, %v278
        %v280 = vlaneseq
        %v281 = vshrl.u32 %v280, 7
        %v282 = vsub.s32 5, %v281
        %v283 = vrot.slane %v238, %v282
        %v286 = vlaneseq
        %v287 = vshrl.u32 %v286, 7
        %v288 = vsub.s32 1, %v287
        %v289 = vrot.slane %v279, %v288
        %v290 = vlaneseq
        %v291 = vshrl.u32 %v290, 7
        %v292 = vsub.s32 1, %v291
        %v293 = vrot.slane %v283, %v292
        %v294 = vmul.f32 %v274, %v289
        %v295 = vmul.f32 %v274, %v293
        %v296 = vadd.f32 %v270, %v294
        %v297 = vadd.f32 %v271, %v295
        %298 = vset.pattern.permute.xlu0 2
        %299 = vperm.xlu0 %298, %v187
        %v300 = vpop.permute.xlu0 %299
        %v302 = vlaneseq
        %v303 = vshrl.u32 %v302, 7
        %v304 = vsub.s32 2, %v303
        %v305 = vrot.slane %v238, %v304
        %v306 = vlaneseq
        %v307 = vshrl.u32 %v306, 7
        %v308 = vsub.s32 6, %v307
        %v309 = vrot.slane %v238, %v308
        %v312 = vlaneseq
        %v313 = vshrl.u32 %v312, 7
        %v314 = vsub.s32 2, %v313
        %v315 = vrot.slane %v305, %v314
        %v316 = vlaneseq
        %v317 = vshrl.u32 %v316, 7
        %v318 = vsub.s32 2, %v317
        %v319 = vrot.slane %v309, %v318
        %v320 = vmul.f32 %v300, %v315
        %v321 = vmul.f32 %v300, %v319
        %v322 = vadd.f32 %v296, %v320
        %v323 = vadd.f32 %v297, %v321
        %324 = vset.pattern.permute.xlu0 3
        %325 = vperm.xlu0 %324, %v187
        %v326 = vpop.permute.xlu0 %325
        %v328 = vlaneseq
        %v329 = vshrl.u32 %v328, 7
        %v330 = vsub.s32 3, %v329
        %v331 = vrot.slane %v238, %v330
        %v332 = vlaneseq
        %v333 = vshrl.u32 %v332, 7
        %v334 = vsub.s32 7, %v333
        %v335 = vrot.slane %v238, %v334
        %v338 = vlaneseq
        %v339 = vshrl.u32 %v338, 7
        %v340 = vsub.s32 3, %v339
        %v341 = vrot.slane %v331, %v340
        %v342 = vlaneseq
        %v343 = vshrl.u32 %v342, 7
        %v344 = vsub.s32 3, %v343
        %v345 = vrot.slane %v335, %v344
        %v346 = vmul.f32 %v326, %v341
        %v347 = vmul.f32 %v326, %v345
        %v348 = vadd.f32 %v322, %v346
        %v349 = vadd.f32 %v323, %v347
        %v352 = vcombine.low %v348, %v349
        %354 = vst [vmem:[%s186] sm:$0xff] %v352
        %s355 = sand.u32 %s96, 1
        %s356 = scalar_lea.sflag [#allocation4], %s355
        %s357 = sand.u32 %s96, 1
        %s358 = smul.addr %s357, 8
        %s359 = scalar_lea.vmem [#allocation5], %s358
        // Predicated region
        $region37: #{tpu_custom_call.1} parent=31 // pred_check
          %p360 = pneg %p106
        $region38: #{tpu_custom_call.1} parent=31 // pred_check_branch
          %362 = sbr.rel (%p360) target = $region40
        $region39: #{tpu_custom_call.1} parent=31 // pred_region
          %s364 = ssub.s32 128, 128
          %365 = vsyncadd %s356, %s364
          %s366 = smul.addr %s20, 2
          %s367 = smul.addr %s366, 64
          %s368 = scalar_lea.hbm %s3, %s367
          %s370 = sshll.u32 %s359, 4
          %s371 = int_to_ptr.vmem [resolvable:$true] %s370
          %373 = dma.vmem_to_hbm [thread:$0]  %s371, 128, %s368, %s356
        $region40: #{tpu_custom_call.1} parent=31 // pred_fallthru
          _
      $region32: #{tpu_custom_call.1} parent=5 // pred_fallthru
        _
      %p374 = scmp.le.s32.totalorder 2, %s15
      // Predicated region
      $region41: #{tpu_custom_call.1} parent=5 // pred_check
        %p375 = pneg %p374
      $region42: #{tpu_custom_call.1} parent=5 // pred_check_branch
        %377 = sbr.rel (%p375) target = $region44
      $region43: #{tpu_custom_call.1} parent=5 // pred_region
        %s378 = ssub.s32 %s15, 2
        // Predicated region
        $region45: #{tpu_custom_call.1} parent=43 // pred_check
          %p379 = pneg %p112
        $region46: #{tpu_custom_call.1} parent=43 // pred_check_branch
          %381 = sbr.rel (%p379) target = $region48
        $region47: #{tpu_custom_call.1} parent=43 // pred_region
          %s382 = sand.u32 %s97, 1
          %s383 = scalar_lea.sflag [#allocation4], %s382
          %s384 = sand.u32 %s97, 1
          %s385 = smul.addr %s384, 8
          %s386 = scalar_lea.vmem [#allocation5], %s385
          %387 = dma.done %s383, 128
        $region48: #{tpu_custom_call.1} parent=43 // pred_fallthru
          _
      $region44: #{tpu_custom_call.1} parent=5 // pred_fallthru
        _
    $region6: #{tpu_custom_call.1} parent=1 // loop_footer
      %s19 = sadd.s32 1, %s15
    $region7: #{tpu_custom_call.1} parent=1 // loop_footer_branch
      %14 = sbr.rel target = $region3
    $region8: #{tpu_custom_call.1} parent=1 // loop_exit
      _
    %388 = vsyncpa [#allocation3], 1
    %s389 = scalar_lea.sflag [#allocation3], 1
    %390 = vsyncpa %s389, 1
    %391 = vsyncpa [#allocation4], 1
    %s392 = scalar_lea.sflag [#allocation4], 1
    %393 = vsyncpa %s392, 1

</llo_original>
